<compile_context>
chip_gen: v6e
topology: v6e:2x2x1
jax: 0.10.0
libtpu: 0.0.40
codegen_flags: <defaults>
</compile_context>

<pallas_src>
import functools

import jax
import jax.numpy as jnp
from jax.experimental import pallas as pl
from jax.experimental.pallas import tpu as pltpu


_LANE = 256                         # last dim: multiple of 128 -> full vregs, unmasked vst
_BLOCK_BYTES = 4 * 1024 * 1024      # ~4 MiB/block: amortizes ~0.35 us/step pipeline overhead
_VMEM_LIMIT_BYTES = 32 * 1024 * 1024  # 2 x (in + out) double-buffers of 4 MiB = 16 MiB, + headroom
_MIN_PALLAS_BYTES = 256 * 1024      # below this a fused jnp expression beats pallas_call fixed cost


def _bpda_kernel(x_ref, o_ref, *, fn):
    # forward(x) = fn(x): the wrapped defense transform on a lane-dense tile.
    y = fn(x_ref[...])
    if y.dtype != o_ref.dtype:      # skip redundant cast when dtypes already match
        y = y.astype(o_ref.dtype)
    o_ref[...] = y


class BPDAWrapper:
    """JAX/Pallas analogue of the PyTorch BPDAWrapper used by SabreWrapper.

    forward(x) == fn(x), with fn evaluated inside a Pallas TPU kernel over a
    lane-dense 2D slab of the flattened input (Pallas path used only above a
    small-input threshold, where the kernel is purely HBM-bandwidth bound).
    # TODO(synk): BPDA's straight-through (identity) backward is a custom_vjp
    # concern and is not part of the forward pass implemented here.
    """

    def __init__(self, fn, min_pallas_bytes=_MIN_PALLAS_BYTES):
        self.fn = fn
        self.min_pallas_bytes = min_pallas_bytes

    def __call__(self, x):
        return self.forward(x)

    def forward(self, x):
        orig_shape = x.shape
        orig_dtype = x.dtype
        n = x.size
        itemsize = jnp.dtype(orig_dtype).itemsize

        # Small-input fast path: dispatch + HBM round trip of pallas_call
        # dominates for tiny tensors; a fused elementwise jnp expression wins.
        if n * itemsize < self.min_pallas_bytes:
            return self.fn(x)

        # Lane-dense repack: flatten to a (rows, _LANE) slab.  Only the lane
        # remainder (< _LANE elements) is ever padded; the row axis is NOT
        # rounded up to the block size -- the grid uses cdiv with a partial
        # (Pallas-masked) edge block instead of a padded slab.
        rows = pl.cdiv(n, _LANE)
        padded = rows * _LANE
        flat = x.reshape(-1)
        if padded != n:
            flat = jnp.pad(flat, (0, padded - n))
        slab = flat.reshape(rows, _LANE)

        # Block sizing: ~_BLOCK_BYTES per block, balanced across blocks so
        # there is no nearly-empty trailing block; block rows stay a multiple
        # of the dtype-aware sublane count (8 f32 / 16 bf16 / 32 int8) so
        # tiled stores remain unmasked.
        sublane = max(1, 32 // itemsize)
        max_block_rows = max(sublane, _BLOCK_BYTES // (_LANE * itemsize))
        if rows <= max_block_rows:
            block_rows, num_blocks = rows, 1      # whole slab: one full-array block
        else:
            num_blocks = pl.cdiv(rows, max_block_rows)
            block_rows = pl.cdiv(pl.cdiv(rows, num_blocks), sublane) * sublane
            num_blocks = pl.cdiv(rows, block_rows)

        kernel = functools.partial(_bpda_kernel, fn=self.fn)
        out = pl.pallas_call(
            kernel,
            out_shape=jax.ShapeDtypeStruct((rows, _LANE), orig_dtype),
            grid=(num_blocks,),
            in_specs=[pl.BlockSpec((block_rows, _LANE), lambda i: (i, 0))],
            out_specs=pl.BlockSpec((block_rows, _LANE), lambda i: (i, 0)),
            compiler_params=pltpu.CompilerParams(
                # Row axis is embarrassingly parallel: shards grid steps across
                # both TensorCores on v7x; measured-neutral on v5e/v6e.
                dimension_semantics=("parallel",),
                vmem_limit_bytes=_VMEM_LIMIT_BYTES,
            ),
            # Advisory: purely HBM-bandwidth bound (one read + one write pass).
            cost_estimate=pl.CostEstimate(
                flops=4 * rows * _LANE,
                transcendentals=0,
                bytes_accessed=2 * rows * _LANE * itemsize,
            ),
        )(slab)

        out_flat = out.reshape(-1)
        if padded != n:
            out_flat = out_flat[:n]   # only slice when padding was actually added
        return out_flat.reshape(orig_shape)


def quantization_defense(x, levels=8.0):
    # Representative non-differentiable defense that BPDAWrapper would wrap.
    # Multiply by a precomputed reciprocal (exact for power-of-two levels).
    inv_levels = 1.0 / levels
    return jnp.clip(jnp.round(x * levels) * inv_levels, 0.0, 1.0)


if __name__ == "__main__":
    key = jax.random.PRNGKey(0)
    x = jax.random.uniform(key, (2, 4, 16, 16), dtype=jnp.float32)

    # min_pallas_bytes=0 forces the Pallas path even for the tiny 8 KiB demo
    # tensor (production default routes such inputs through the jnp fast path).
    wrapper = BPDAWrapper(quantization_defense, min_pallas_bytes=0)
    out = jax.block_until_ready(wrapper(x))

    # Correctness check against the pure-JAX reference of forward(x) = fn(x).
    ref = quantization_defense(x)
    assert out.shape == x.shape and out.dtype == x.dtype
    assert jnp.allclose(out, ref, atol=1e-6), "mismatch vs reference fn(x)"

    print("KERNEL_OK")
</pallas_src>

<mosaic_0001>
module attributes {stable_mosaic.version = 11 : i64} {
  func.func @_bpda_kernel(%arg0: i32, %arg1: memref<8x256xf32, #tpu.memory_space<vmem>>, %arg2: memref<8x256xf32, #tpu.memory_space<vmem>>) attributes {dimension_semantics = [#tpu.dimension_semantics<parallel>], iteration_bounds = array<i64: 1>, scalar_prefetch = 0 : i64, scratch_operands = 0 : i64, tpu.core_type = #tpu.core_type<tc>, window_params = [{transform_indices = @transform_0, window_bounds = array<i64: 8, 256>}, {transform_indices = @transform_1, window_bounds = array<i64: 8, 256>}]} {
    %c0 = arith.constant 0 : index
    %c0_0 = arith.constant 0 : index
    %0 = vector.load %arg1[%c0, %c0_0] : memref<8x256xf32, #tpu.memory_space<vmem>>, vector<8x256xf32>
    %cst = arith.constant 8.000000e+00 : f32
    %1 = vector.broadcast %cst : f32 to vector<8x256xf32>
    %2 = arith.mulf %0, %1 : vector<8x256xf32>
    %3 = math.roundeven %2 : vector<8x256xf32>
    %cst_1 = arith.constant 1.250000e-01 : f32
    %4 = vector.broadcast %cst_1 : f32 to vector<8x256xf32>
    %5 = arith.mulf %3, %4 : vector<8x256xf32>
    %cst_2 = arith.constant 0.000000e+00 : f32
    %cst_3 = arith.constant 1.000000e+00 : f32
    %6 = vector.broadcast %cst_2 : f32 to vector<8x256xf32>
    %7 = arith.maximumf %6, %5 : vector<8x256xf32>
    %8 = vector.broadcast %cst_3 : f32 to vector<8x256xf32>
    %9 = arith.minimumf %8, %7 : vector<8x256xf32>
    %c0_4 = arith.constant 0 : index
    %c0_5 = arith.constant 0 : index
    %10 = vector.load %arg2[%c0_4, %c0_5] : memref<8x256xf32, #tpu.memory_space<vmem>>, vector<8x256xf32>
    tpu.vector_store %arg2[%c0_4, %c0_5], %9 {strides = array<i32>} : memref<8x256xf32, #tpu.memory_space<vmem>>, vector<8x256xf32>,
    return
  }
  func.func @transform_0(%arg0: i32) -> (i32, i32) {
    %c0_i32 = arith.constant 0 : i32
    %c0_i32_0 = arith.constant 0 : i32
    return %arg0, %c0_i32 : i32, i32
  }
  func.func @transform_1(%arg0: i32) -> (i32, i32) {
    %c0_i32 = arith.constant 0 : i32
    %c0_i32_0 = arith.constant 0 : i32
    return %arg0, %c0_i32 : i32, i32
  }
}

</mosaic_0001>

<llo_original>
// kernel: tpu_custom_call.1
$region0: #{tpu_custom_call.1}
  #allocation0 [shape = 'u32[]', space=smem, size = 0x4, offset = 0x4, fixed_abs, tag = 'smem constant byte address 0x4 - core index']
  #allocation1 [shape = 'u32[144,128]{1,0:T(1,128)}', space=vmem, size = 0x12000, scoped, tag = 'internal scratch']
  %s0 = inlined_call_operand.hbm [shape: f32[8,256], index: 0, kind: input, shape index: {}]
  %s1 = inlined_call_operand.hbm [shape: f32[8,256], index: 1, kind: output, shape index: {}]
  %s2 = sld [smem:[#allocation0]]
  $region18: #{tpu_custom_call.1} parent=0
    _
  %s4 = ssub.s32 1, %s2
  %s5 = scalar_select 0, %s4, %s2
  $region1: #{tpu_custom_call.1} parent=0
    #allocation2 [shape = 'u8[8192]{0}', space=vmem, size = 0x2000, scoped, tag = 'input window, operand 0, single buffered']
    #allocation3 [shape = 's32[1]{0}', space=sflag, size = 0x4, scoped, tag = 'scoped memory for tpu_custom_call.1']
    #allocation4 [shape = 's32[1]{0}', space=sflag, size = 0x4, scoped, tag = 'scoped memory for tpu_custom_call.1']
    #allocation5 [shape = 'u8[8192]{0}', space=vmem, size = 0x2000, scoped, tag = 'output window, operand 0, single buffered']
    %6 = vsyncpa [#allocation3], 0
    %7 = vsyncpa [#allocation4], 0
    // Predicated region
    $region2: #{tpu_custom_call.1} parent=1 // pred_check
      _
    $region3: #{tpu_custom_call.1} parent=1 // pred_check_branch
      %9 = sbr.rel (0) target = $region5
    $region4: #{tpu_custom_call.1} parent=1 // pred_region
      %s11 = ssub.s32 256, 256
      %12 = vsyncadd [#allocation3], %s11
      %s14 = sshll.u32 [#allocation2], 4
      %s15 = int_to_ptr.vmem [resolvable:$true] %s14
      %17 = dma.hbm_to_vmem [thread:$0]  %s0, 256, %s15, [#allocation3]
    $region5: #{tpu_custom_call.1} parent=1 // pred_fallthru
      _
    // Predicated region
    $region6: #{tpu_custom_call.1} parent=1 // pred_check
      _
    $region7: #{tpu_custom_call.1} parent=1 // pred_check_branch
      %19 = sbr.rel (0) target = $region9
    $region8: #{tpu_custom_call.1} parent=1 // pred_region
      %20 = dma.done [#allocation3], 256
    $region9: #{tpu_custom_call.1} parent=1 // pred_fallthru
      _
    %v21 = vld [vmem:[#allocation2] sm:$0xff]
    %v22 = vld [vmem:[#allocation2 + $0x8] sm:$0xff]
    %v23 = vmul.f32 %v21, 8.0
    %v24 = vmul.f32 %v22, 8.0
    %v25 = vround.ne.pseudo %v23
    %v26 = vround.ne.pseudo %v24
    %v27 = vmul.f32 %v25, 0.125
    %v28 = vmul.f32 %v26, 0.125
    %v29 = vmax.f32 %v27, 0.0
    %v30 = vmax.f32 %v28, 0.0
    %v31 = vmin.f32 %v29, 1.0
    %v32 = vmin.f32 %v30, 1.0
    %33 = vst [vmem:[#allocation5] sm:$0xff] %v31
    %34 = vst [vmem:[#allocation5 + $0x8] sm:$0xff] %v32
    // Predicated region
    $region10: #{tpu_custom_call.1} parent=1 // pred_check
      _
    $region11: #{tpu_custom_call.1} parent=1 // pred_check_branch
      %36 = sbr.rel (0) target = $region13
    $region12: #{tpu_custom_call.1} parent=1 // pred_region
      %s38 = ssub.s32 256, 256
      %39 = vsyncadd [#allocation4], %s38
      %s41 = sshll.u32 [#allocation5], 4
      %s42 = int_to_ptr.vmem [resolvable:$true] %s41
      %44 = dma.vmem_to_hbm [thread:$0]  %s42, 256, %s1, [#allocation4]
    $region13: #{tpu_custom_call.1} parent=1 // pred_fallthru
      _
    // Predicated region
    $region14: #{tpu_custom_call.1} parent=1 // pred_check
      _
    $region15: #{tpu_custom_call.1} parent=1 // pred_check_branch
      %46 = sbr.rel (0) target = $region17
    $region16: #{tpu_custom_call.1} parent=1 // pred_region
      %47 = dma.done [#allocation4], 256
    $region17: #{tpu_custom_call.1} parent=1 // pred_fallthru
      _
    %48 = vsyncpa [#allocation3], 1
    %49 = vsyncpa [#allocation4], 1

</llo_original>
